<compile_context>
chip_gen: v6e
topology: v6e:2x2x1
jax: 0.10.0
libtpu: 0.0.40
codegen_flags: <defaults>
</compile_context>

<pallas_src>
import functools

import jax
import jax.numpy as jnp
import numpy as np
from jax import lax
from jax.experimental import pallas as pl
from jax.experimental.pallas import tpu as pltpu


# ---------------------------------------------------------------------------
# Kernel
# ---------------------------------------------------------------------------
def _bottleneck_kernel(x_ref, w1_ref, b1_ref, w2_ref, b2_ref, w3_ref, b3_ref,
                       mask_ref, o_ref, *, roll_amounts):
    """One batch tile of the bottleneck block, channel-first (C, H*W) layout.

    x_ref   : (B, Cin, M) bf16  -- M = H*W on the lane axis (lane-dense)
    w1_ref  : (C, Cin)    bf16  -- BN1-folded 1x1 weight
    b1_ref  : (C, 1)      f32
    w2_ref  : (C, 9*C)    bf16  -- BN2-folded 3x3 weight, im2col column order
    b2_ref  : (C, 1)      f32
    w3_ref  : (4C, C)     bf16  -- BN3-folded 1x1 weight
    b3_ref  : (4C, 1)     f32
    mask_ref: (9, M)      f32   -- spatial validity mask per 3x3 tap
    o_ref   : (B, 4C, M)  f32
    """
    n_imgs = x_ref.shape[0]

    w1 = w1_ref[...]
    w2 = w2_ref[...]
    w3 = w3_ref[...]
    b1 = b1_ref[...]
    b2 = b2_ref[...]
    b3 = b3_ref[...]
    mask = mask_ref[...]

    for b in range(n_imgs):                        # small static batch-tile unroll
        # ---- conv1 (1x1) + bn1 + relu : (C, Cin) @ (Cin, M) -> (C, M) ----
        h1 = jnp.dot(w1, x_ref[b], preferred_element_type=jnp.float32)
        h1 = jnp.maximum(h1 + b1, 0.0)

        # ---- conv2 (3x3, pad=1) as ONE im2col matmul ----
        # 8 lane-rolls (XLU slot, otherwise idle) + boundary masks build the
        # (9*C, M) patch matrix; a single MXU matmul does all nine taps.
        taps = []
        for t, amt in enumerate(roll_amounts):
            if amt == 0:                           # centre tap: no shift, no mask
                taps.append(h1)
            else:
                rolled = pltpu.roll(h1, amt, axis=1)
                taps.append(rolled * mask[t:t + 1])
        im2col = jnp.concatenate(taps, axis=0).astype(jnp.bfloat16)
        h2 = jnp.dot(w2, im2col, preferred_element_type=jnp.float32)
        h2 = jnp.maximum(h2 + b2, 0.0)

        # ---- conv3 (1x1) + bn3, identity residual (re-read x_ref), relu ----
        h3 = jnp.dot(w3, h2.astype(jnp.bfloat16),
                     preferred_element_type=jnp.float32)
        h3 = h3 + b3 + x_ref[b].astype(jnp.float32)
        o_ref[b] = jnp.maximum(h3, 0.0).astype(o_ref.dtype)


# ---------------------------------------------------------------------------
# pltpu.roll direction probe (one-time, cached)
# ---------------------------------------------------------------------------
@functools.lru_cache(maxsize=None)
def _roll_matches_np_convention():
    """True iff pltpu.roll(x, k, axis)[..., i] == x[..., i - k] (np.roll style).

    The 3x3 tap shifts are derived from this so they stay correct regardless
    of the backend's rotation direction convention.
    """
    def probe(x_ref, o_ref):
        o_ref[...] = pltpu.roll(x_ref[...], 1, axis=1)

    x = jnp.tile(jnp.arange(128, dtype=jnp.float32)[None, :], (8, 1))
    y = pl.pallas_call(
        probe, out_shape=jax.ShapeDtypeStruct((8, 128), jnp.float32))(x)
    return bool(jax.device_get(y)[0, 1] == 0.0)


# ---------------------------------------------------------------------------
# Parameter preparation (BN folding, im2col weight, tap masks)
# ---------------------------------------------------------------------------
def _fold_bn(gamma, beta, mean, var, eps=1e-5):
    scale = gamma * lax.rsqrt(var + eps)
    bias = beta - mean * scale
    return scale, bias


def prepare_params(raw_params, H, W):
    """Fold eval-mode BN into the conv weights, build the (C, 9C) im2col weight
    for the 3x3 conv, the tap shifts / validity masks, and cast MXU operands to
    bf16. Returns exactly what the kernel consumes."""
    (w1, bn1), (w2, bn2), (w3, bn3) = raw_params
    C, Cin = w1.shape[0], w1.shape[1]

    s1, c1 = _fold_bn(*bn1)
    s2, c2 = _fold_bn(*bn2)
    s3, c3 = _fold_bn(*bn3)

    w1f = (w1.reshape(C, Cin) * s1[:, None]).astype(jnp.bfloat16)        # (C, Cin)
    w2f = w2 * s2[:, None, None, None]                                   # (O, I, kh, kw)
    w2f = (jnp.transpose(w2f, (0, 2, 3, 1))                              # (O, kh, kw, I)
           .reshape(C, 9 * C).astype(jnp.bfloat16))                      # col = t*C + i
    w3f = (w3.reshape(4 * C, C) * s3[:, None]).astype(jnp.bfloat16)      # (4C, C)

    b1 = c1[:, None].astype(jnp.float32)
    b2 = c2[:, None].astype(jnp.float32)
    b3 = c3[:, None].astype(jnp.float32)

    # 3x3 taps: signed shift in the flattened h*W + w index + validity mask.
    shifts = tuple(dy * W + dx for dy in (-1, 0, 1) for dx in (-1, 0, 1))
    hh, ww = np.meshgrid(np.arange(H), np.arange(W), indexing="ij")
    rows = []
    for dy in (-1, 0, 1):
        for dx in (-1, 0, 1):
            ok = ((hh + dy >= 0) & (hh + dy < H) &
                  (ww + dx >= 0) & (ww + dx < W))
            rows.append(ok.reshape(-1))
    mask = jnp.asarray(np.stack(rows), dtype=jnp.float32)                # (9, H*W)

    return dict(w1=w1f, b1=b1, w2=w2f, b2=b2, w3=w3f, b3=b3,
                mask=mask, shifts=shifts)


# ---------------------------------------------------------------------------
# Wrapper
# ---------------------------------------------------------------------------
def bottleneck_pallas(x, raw_params):
    """BottleNeck forward. x: (N, Cin, H, W) float32 (NCHW, PyTorch layout)."""
    N, Cin, H, W = x.shape
    p = prepare_params(raw_params, H, W)
    C = p["w1"].shape[0]
    assert Cin == 4 * C, "identity shortcut requires in_channels == 4*out_channels"
    M = H * W  # lane axis of every block; multiple of 128 -> unmasked vld/vst

    # Whole images per grid step; largest batch tile (<= 8) dividing N.
    b_tile = next(d for d in range(min(N, 8), 0, -1) if N % d == 0)

    # Convert signed tap shifts to pltpu.roll amounts for the probed direction
    # (rolled[:, m] must equal h1[:, (m + shift) % M]).
    if _roll_matches_np_convention():
        roll_amounts = tuple((-s) % M for s in p["shifts"])
    else:
        roll_amounts = tuple(s % M for s in p["shifts"])

    x_flat = x.reshape(N, Cin, M).astype(jnp.bfloat16)   # channel-first, lane-dense

    kernel = functools.partial(_bottleneck_kernel, roll_amounts=roll_amounts)
    full = lambda a: pl.BlockSpec(a.shape, lambda n: (0,) * a.ndim)

    grid_spec = pltpu.PrefetchScalarGridSpec(
        num_scalar_prefetch=0,
        grid=(N // b_tile,),
        in_specs=[
            pl.BlockSpec((b_tile, Cin, M), lambda n: (n, 0, 0)),
            full(p["w1"]), full(p["b1"]),
            full(p["w2"]), full(p["b2"]),
            full(p["w3"]), full(p["b3"]),
            full(p["mask"]),
        ],
        out_specs=pl.BlockSpec((b_tile, Cin, M), lambda n: (n, 0, 0)),
    )

    out = pl.pallas_call(
        kernel,
        out_shape=jax.ShapeDtypeStruct((N, Cin, M), jnp.float32),
        grid_spec=grid_spec,
        compiler_params=pltpu.CompilerParams(
            dimension_semantics=("parallel",),        # batch tiles -> megacore
            vmem_limit_bytes=32 * 1024 * 1024,        # safe on v5e/v6e/v7x
        ),
    )(x_flat, p["w1"], p["b1"], p["w2"], p["b2"], p["w3"], p["b3"], p["mask"])

    return out.reshape(N, Cin, H, W)


# ---------------------------------------------------------------------------
# Reference + test
# ---------------------------------------------------------------------------
def make_raw_params(key, in_channels, out_channels):
    """Random parameters in the PyTorch module's layout (OIHW conv weights,
    eval-mode BatchNorm statistics)."""
    C, Cin = out_channels, in_channels
    ks = jax.random.split(key, 6)
    w1 = 0.1 * jax.random.normal(ks[0], (C, Cin, 1, 1), jnp.float32)
    w2 = 0.1 * jax.random.normal(ks[1], (C, C, 3, 3), jnp.float32)
    w3 = 0.1 * jax.random.normal(ks[2], (4 * C, C, 1, 1), jnp.float32)

    def bn(k, n):
        k1, k2, k3, k4 = jax.random.split(k, 4)
        gamma = jax.random.uniform(k1, (n,), jnp.float32, 0.5, 1.5)
        beta = 0.1 * jax.random.normal(k2, (n,), jnp.float32)
        mean = 0.1 * jax.random.normal(k3, (n,), jnp.float32)
        var = jax.random.uniform(k4, (n,), jnp.float32, 0.5, 1.5)
        return (gamma, beta, mean, var)

    return ((w1, bn(ks[3], C)), (w2, bn(ks[4], C)), (w3, bn(ks[5], 4 * C)))


def bottleneck_ref(x, raw_params):
    """Pure-JAX NCHW reference using the same BN-folded, bf16-rounded weights
    and bf16-rounded input the kernel sees (remaining difference: the kernel's
    bf16 rounding of intermediate activations)."""
    N, Cin, H, W = x.shape
    p = prepare_params(raw_params, H, W)
    C = p["w1"].shape[0]

    xr = x.astype(jnp.bfloat16).astype(jnp.float32)
    w1 = p["w1"].astype(jnp.float32)                                      # (C, Cin)
    w2 = (p["w2"].astype(jnp.float32)
          .reshape(C, 3, 3, C).transpose(0, 3, 1, 2))                     # OIHW
    w3 = p["w3"].astype(jnp.float32)                                      # (4C, C)
    b1 = p["b1"][:, 0][None, :, None, None]
    b2 = p["b2"][:, 0][None, :, None, None]
    b3 = p["b3"][:, 0][None, :, None, None]

    h = jnp.maximum(jnp.einsum("oi,nihw->nohw", w1, xr) + b1, 0.0)
    h = lax.conv_general_dilated(h, w2, (1, 1), ((1, 1), (1, 1)),
                                 dimension_numbers=("NCHW", "OIHW", "NCHW"))
    h = jnp.maximum(h + b2, 0.0)
    h = jnp.einsum("oi,nihw->nohw", w3, h) + b3
    return jnp.maximum(h + xr, 0.0)


if __name__ == "__main__":
    key = jax.random.PRNGKey(0)
    k_x, k_p = jax.random.split(key)

    out_channels = 8
    in_channels = 4 * out_channels      # identity shortcut: Cin == 4 * C
    N, H, W = 2, 16, 16

    x = jax.random.normal(k_x, (N, in_channels, H, W), jnp.float32)
    raw_params = make_raw_params(k_p, in_channels, out_channels)

    out = bottleneck_pallas(x, raw_params)
    out = jax.block_until_ready(out)

    ref = bottleneck_ref(x, raw_params)
    np.testing.assert_allclose(np.asarray(out), np.asarray(ref),
                               rtol=2e-2, atol=2e-2)
    print("KERNEL_OK")
</pallas_src>

<mosaic_0001>
module attributes {stable_mosaic.version = 11 : i64} {
  func.func @probe(%arg0: memref<8x128xf32, #tpu.memory_space<vmem>>, %arg1: memref<8x128xf32, #tpu.memory_space<vmem>>) attributes {dimension_semantics = [], scalar_prefetch = 0 : i64, scratch_operands = 0 : i64, tpu.core_type = #tpu.core_type<tc>} {
    %c0 = arith.constant 0 : index
    %c0_0 = arith.constant 0 : index
    %0 = vector.load %arg0[%c0, %c0_0] : memref<8x128xf32, #tpu.memory_space<vmem>>, vector<8x128xf32>
    %c1_i32 = arith.constant 1 : i32
    %1 = tpu.dynamic_rotate %0 by %c1_i32 dim 1 : vector<8x128xf32>, i32 -> vector<8x128xf32>
    %c0_1 = arith.constant 0 : index
    %c0_2 = arith.constant 0 : index
    %2 = vector.load %arg1[%c0_1, %c0_2] : memref<8x128xf32, #tpu.memory_space<vmem>>, vector<8x128xf32>
    tpu.vector_store %arg1[%c0_1, %c0_2], %1 {strides = array<i32>} : memref<8x128xf32, #tpu.memory_space<vmem>>, vector<8x128xf32>,
    return
  }
}

</mosaic_0001>

<llo_original>
// kernel: tpu_custom_call.1
$region0: #{tpu_custom_call.1}
  #allocation0 [shape = 'u32[]', space=smem, size = 0x4, offset = 0x4, fixed_abs, tag = 'smem constant byte address 0x4 - core index']
  #allocation1 [shape = 'u32[144,128]{1,0:T(1,128)}', space=vmem, size = 0x12000, scoped, tag = 'internal scratch']
  %s0 = inlined_call_operand.hbm [shape: f32[8,128], index: 0, kind: input, shape index: {}]
  %s1 = inlined_call_operand.hbm [shape: f32[8,128], index: 1, kind: output, shape index: {}]
  %s2 = sld [smem:[#allocation0]]
  $region18: #{tpu_custom_call.1} parent=0
    _
  %s4 = ssub.s32 1, %s2
  %s5 = scalar_select 0, %s4, %s2
  $region1: #{tpu_custom_call.1} parent=0
    #allocation2 [shape = 'u8[4096]{0}', space=vmem, size = 0x1000, scoped, tag = 'input window, operand 0, single buffered']
    #allocation3 [shape = 's32[1]{0}', space=sflag, size = 0x4, scoped, tag = 'scoped memory for tpu_custom_call.1']
    #allocation4 [shape = 's32[1]{0}', space=sflag, size = 0x4, scoped, tag = 'scoped memory for tpu_custom_call.1']
    #allocation5 [shape = 'u8[4096]{0}', space=vmem, size = 0x1000, scoped, tag = 'output window, operand 0, single buffered']
    %6 = vsyncpa [#allocation3], 0
    %7 = vsyncpa [#allocation4], 0
    // Predicated region
    $region2: #{tpu_custom_call.1} parent=1 // pred_check
      _
    $region3: #{tpu_custom_call.1} parent=1 // pred_check_branch
      %9 = sbr.rel (0) target = $region5
    $region4: #{tpu_custom_call.1} parent=1 // pred_region
      %s11 = ssub.s32 128, 128
      %12 = vsyncadd [#allocation3], %s11
      %s14 = sshll.u32 [#allocation2], 4
      %s15 = int_to_ptr.vmem [resolvable:$true] %s14
      %17 = dma.hbm_to_vmem [thread:$0]  %s0, 128, %s15, [#allocation3]
    $region5: #{tpu_custom_call.1} parent=1 // pred_fallthru
      _
    // Predicated region
    $region6: #{tpu_custom_call.1} parent=1 // pred_check
      _
    $region7: #{tpu_custom_call.1} parent=1 // pred_check_branch
      %19 = sbr.rel (0) target = $region9
    $region8: #{tpu_custom_call.1} parent=1 // pred_region
      %20 = dma.done [#allocation3], 128
    $region9: #{tpu_custom_call.1} parent=1 // pred_fallthru
      _
    %v21 = vld [vmem:[#allocation2] sm:$0xff]
    %22 = vrot.lane.b32.xlu0 %v21, 1
    %v23 = vpop.permute.xlu0 %22
    %24 = vst [vmem:[#allocation5] sm:$0xff] %v23
    // Predicated region
    $region10: #{tpu_custom_call.1} parent=1 // pred_check
      _
    $region11: #{tpu_custom_call.1} parent=1 // pred_check_branch
      %26 = sbr.rel (0) target = $region13
    $region12: #{tpu_custom_call.1} parent=1 // pred_region
      %s28 = ssub.s32 128, 128
      %29 = vsyncadd [#allocation4], %s28
      %s31 = sshll.u32 [#allocation5], 4
      %s32 = int_to_ptr.vmem [resolvable:$true] %s31
      %34 = dma.vmem_to_hbm [thread:$0]  %s32, 128, %s1, [#allocation4]
    $region13: #{tpu_custom_call.1} parent=1 // pred_fallthru
      _
    // Predicated region
    $region14: #{tpu_custom_call.1} parent=1 // pred_check
      _
    $region15: #{tpu_custom_call.1} parent=1 // pred_check_branch
      %36 = sbr.rel (0) target = $region17
    $region16: #{tpu_custom_call.1} parent=1 // pred_region
      %37 = dma.done [#allocation4], 128
    $region17: #{tpu_custom_call.1} parent=1 // pred_fallthru
      _
    %38 = vsyncpa [#allocation3], 1
    %39 = vsyncpa [#allocation4], 1

</llo_original>
